<compile_context>
chip_gen: v5e
topology: v5e:2x2
jax: 0.10.0
libtpu: 0.0.40
codegen_flags: <defaults>
</compile_context>

<pallas_src>
import functools

import jax
import jax.numpy as jnp
from jax.experimental import pallas as pl
from jax.experimental.pallas import tpu as pltpu

_LANE = 128
_MAX_BLOCK_ROWS = 4096   # 4096 x 128 f32 = 2 MiB per input block
_ACC_ROWS = 256          # fixed accumulator height (256 x 128 f32 = 128 KiB)


def _round_up(x, m):
    return ((x + m - 1) // m) * m


def _msle_kernel(out_ref, tgt_ref, acc_ref, *, rows, block_rows, acc_rows,
                 n_chunks, need_mask):
    """Accumulates sum((slog(out) - slog(tgt))**2) of one block into acc_ref."""
    c = pl.program_id(0)            # TensorCore ("parallel") axis
    i = pl.program_id(1)            # sequential block axis on this core
    bpc = pl.num_programs(1)

    @pl.when(i == 0)
    def _():
        acc_ref[...] = jnp.zeros_like(acc_ref)

    b = c * bpc + i                 # logical (unclamped) block index

    def signed_log1p(x):
        l = jnp.log1p(jnp.abs(x))
        return jnp.where(x < 0, -l, l)   # cheap sign transfer (no sign()*mul)

    def accumulate(masked):
        # Fold the (block_rows, 128) block into the fixed (acc_rows, 128)
        # accumulator with a short static loop of chunked loads/adds.
        for k in range(n_chunks):
            r0 = k * acc_rows
            o = out_ref[r0:r0 + acc_rows, :].astype(jnp.float32)
            t = tgt_ref[r0:r0 + acc_rows, :].astype(jnp.float32)
            d = signed_log1p(o) - signed_log1p(t)
            sq = d * d
            if masked:
                # Element-wise row mask BEFORE any accumulation, so the
                # unspecified data Pallas leaves in out-of-bounds rows (which
                # may be NaN/Inf) never reaches the accumulator.
                row_ids = (b * block_rows + r0
                           + jax.lax.broadcasted_iota(jnp.int32, sq.shape, 0))
                sq = jnp.where(row_ids < rows, sq, 0.0)
            acc_ref[...] += sq

    if need_mask:
        # Only the (at most one) tail block per core is ragged; gate the
        # extra VPU work behind a scalar branch so steady-state steps stay
        # mask-free.
        is_tail = (b + 1) * block_rows > rows

        @pl.when(jnp.logical_not(is_tail))
        def _():
            accumulate(False)

        @pl.when(is_tail)
        def _():
            accumulate(True)
    else:
        accumulate(False)


def msle_loss(out, target):
    """Mean squared logarithmic error (scalar float32), Pallas TPU kernel."""
    assert out.shape == target.shape, "out/target must have matching shapes"
    n = int(out.size)
    assert n > 0

    o_flat = out.reshape(-1)
    t_flat = target.reshape(-1)

    # Pad only when the element count is not a whole number of 128-lane rows.
    # Zero padding contributes exactly 0 (signed_log1p(0) == 0).
    lane_pad = (-n) % _LANE
    if lane_pad:
        o_flat = jnp.pad(o_flat, (0, lane_pad))
        t_flat = jnp.pad(t_flat, (0, lane_pad))

    rows = (n + lane_pad) // _LANE
    o2 = o_flat.reshape(rows, _LANE)
    t2 = t_flat.reshape(rows, _LANE)

    # ----- grid / block choice ------------------------------------------
    # Split across both TensorCores (v7x) whenever each core gets real work;
    # on single-core chips the leading axis is just a loop boundary.
    ncores = 2 if rows >= 2 * _ACC_ROWS else 1

    if rows <= _ACC_ROWS:
        block_rows = _round_up(rows, 8)
        acc_rows = block_rows
    else:
        n_blocks = _round_up(max(ncores, pl.cdiv(rows, _MAX_BLOCK_ROWS)),
                             ncores)
        # Balanced blocks so the last block is never nearly empty.
        block_rows = _round_up(pl.cdiv(rows, n_blocks), _ACC_ROWS)
        acc_rows = _ACC_ROWS

    n_chunks = block_rows // acc_rows
    n_blocks_real = pl.cdiv(rows, block_rows)     # blocks that hold real data
    bpc = pl.cdiv(n_blocks_real, ncores)          # blocks per core
    n_blocks_total = ncores * bpc                 # grid-visible blocks
    need_mask = n_blocks_total * block_rows > rows

    if n_blocks_total == n_blocks_real:
        in_index_map = lambda c, i: (c * bpc + i, 0)
    else:
        # Odd real block count split over 2 cores: clamp core 1's phantom
        # last block onto the last real block; its contribution is fully
        # masked out in the kernel (all its logical rows are >= `rows`).
        in_index_map = lambda c, i: (
            jnp.minimum(c * bpc + i, n_blocks_real - 1), 0)

    kernel = functools.partial(
        _msle_kernel, rows=rows, block_rows=block_rows, acc_rows=acc_rows,
        n_chunks=n_chunks, need_mask=need_mask)

    partial_sums = pl.pallas_call(
        kernel,
        out_shape=jax.ShapeDtypeStruct((ncores, acc_rows, _LANE), jnp.float32),
        grid_spec=pltpu.PrefetchScalarGridSpec(
            num_scalar_prefetch=0,
            grid=(ncores, bpc),
            in_specs=[
                pl.BlockSpec((block_rows, _LANE), in_index_map),
                pl.BlockSpec((block_rows, _LANE), in_index_map),
            ],
            out_specs=pl.BlockSpec((None, acc_rows, _LANE),
                                   lambda c, i: (c, 0, 0)),
        ),
        compiler_params=pltpu.CompilerParams(
            dimension_semantics=("parallel", "arbitrary")),
    )(o2, t2)

    # Tiny epilogue in plain JAX: sum the per-core partial accumulators and
    # normalize by the true (unpadded) element count.
    return jnp.sum(partial_sums) / jnp.float32(n)


def _msle_ref(out, target):
    lo = jnp.sign(out) * jnp.log1p(jnp.abs(out))
    lt = jnp.sign(target) * jnp.log1p(jnp.abs(target))
    return jnp.mean((lo - lt) ** 2)


if __name__ == "__main__":
    key = jax.random.PRNGKey(0)
    k1, k2, k3, k4, k5, k6 = jax.random.split(key, 6)

    # Primary check: typical small regression output tensor (no lane pad,
    # single block, single core).
    shape = (2, 4, 16, 16)
    out = jax.random.normal(k1, shape, dtype=jnp.float32) * 3.0
    target = jax.random.normal(k2, shape, dtype=jnp.float32) * 3.0
    loss = msle_loss(out, target)
    jax.block_until_ready(loss)
    ref = _msle_ref(out, target)
    assert jnp.allclose(loss, ref, rtol=1e-5, atol=1e-6), (loss, ref)

    # Secondary check: lane pad + dual-core split + chunked accumulator +
    # masked tail block.
    shape2 = (5, 1031, 64)
    out2 = jax.random.normal(k3, shape2, dtype=jnp.float32) * 3.0
    target2 = jax.random.normal(k4, shape2, dtype=jnp.float32) * 3.0
    loss2 = msle_loss(out2, target2)
    jax.block_until_ready(loss2)
    ref2 = _msle_ref(out2, target2)
    assert jnp.allclose(loss2, ref2, rtol=1e-3, atol=1e-5), (loss2, ref2)

    # Third check: tiny ragged input (single partial row, heavy masking).
    shape3 = (3, 37)
    out3 = jax.random.normal(k5, shape3, dtype=jnp.float32) * 3.0
    target3 = jax.random.normal(k6, shape3, dtype=jnp.float32) * 3.0
    loss3 = msle_loss(out3, target3)
    jax.block_until_ready(loss3)
    ref3 = _msle_ref(out3, target3)
    assert jnp.allclose(loss3, ref3, rtol=1e-5, atol=1e-6), (loss3, ref3)

    print("KERNEL_OK")
</pallas_src>

<mosaic_0001>
module attributes {stable_mosaic.version = 11 : i64} {
  func.func @_msle_kernel(%arg0: i32, %arg1: i32, %arg2: memref<16x128xf32, #tpu.memory_space<vmem>>, %arg3: memref<16x128xf32, #tpu.memory_space<vmem>>, %arg4: memref<1x16x128xf32, #tpu.memory_space<vmem>>) attributes {dimension_semantics = [#tpu.dimension_semantics<parallel>, #tpu.dimension_semantics<arbitrary>], iteration_bounds = array<i64: 1, 1>, scalar_prefetch = 0 : i64, scratch_operands = 0 : i64, tpu.core_type = #tpu.core_type<tc>, window_params = [{transform_indices = @transform_0, window_bounds = array<i64: 16, 128>}, {transform_indices = @transform_1, window_bounds = array<i64: 16, 128>}, {transform_indices = @transform_2, window_bounds = array<i64: 1, 16, 128>}]} {
    %c0_i32 = arith.constant 0 : i32
    %0 = arith.cmpi eq, %arg1, %c0_i32 : i32
    %1 = arith.extui %0 : i1 to i32
    %c0_i32_0 = arith.constant 0 : i32
    %2 = arith.cmpi ne, %1, %c0_i32_0 : i32
    scf.if %2 {
      %cst_13 = arith.constant 0.000000e+00 : f32
      %27 = vector.broadcast %cst_13 : f32 to vector<16x128xf32>
      %c0_14 = arith.constant 0 : index
      %c0_15 = arith.constant 0 : index
      %c0_16 = arith.constant 0 : index
      %28 = vector.load %arg4[%c0_14, %c0_15, %c0_16] : memref<1x16x128xf32, #tpu.memory_space<vmem>>, vector<1x16x128xf32>
      %29 = vector.shape_cast %28 : vector<1x16x128xf32> to vector<16x128xf32>
      %30 = vector.shape_cast %27 : vector<16x128xf32> to vector<1x16x128xf32>
      tpu.vector_store %arg4[%c0_14, %c0_15, %c0_16], %30 {strides = array<i32>} : memref<1x16x128xf32, #tpu.memory_space<vmem>>, vector<1x16x128xf32>,
    } else {
    }
    %c0 = arith.constant 0 : index
    %c0_1 = arith.constant 0 : index
    %3 = vector.load %arg2[%c0, %c0_1] : memref<16x128xf32, #tpu.memory_space<vmem>>, vector<16x128xf32>
    %c0_2 = arith.constant 0 : index
    %c0_3 = arith.constant 0 : index
    %4 = vector.load %arg3[%c0_2, %c0_3] : memref<16x128xf32, #tpu.memory_space<vmem>>, vector<16x128xf32>
    %5 = math.absf %3 : vector<16x128xf32>
    %6 = math.log1p %5 : vector<16x128xf32>
    %cst = arith.constant 0.000000e+00 : f32
    %7 = vector.broadcast %cst : f32 to vector<16x128xf32>
    %8 = arith.cmpf olt, %3, %7 : vector<16x128xf32>
    %cst_4 = arith.constant 0.000000e+00 : f32
    %9 = vector.broadcast %cst_4 : f32 to vector<16x128xf32>
    %10 = arith.subf %9, %6 : vector<16x128xf32>
    %11 = arith.select %8, %10, %6 : vector<16x128xi1>, vector<16x128xf32>
    %12 = math.absf %4 : vector<16x128xf32>
    %13 = math.log1p %12 : vector<16x128xf32>
    %cst_5 = arith.constant 0.000000e+00 : f32
    %14 = vector.broadcast %cst_5 : f32 to vector<16x128xf32>
    %15 = arith.cmpf olt, %4, %14 : vector<16x128xf32>
    %cst_6 = arith.constant 0.000000e+00 : f32
    %16 = vector.broadcast %cst_6 : f32 to vector<16x128xf32>
    %17 = arith.subf %16, %13 : vector<16x128xf32>
    %18 = arith.select %15, %17, %13 : vector<16x128xi1>, vector<16x128xf32>
    %19 = arith.subf %11, %18 : vector<16x128xf32>
    %20 = arith.mulf %19, %19 : vector<16x128xf32>
    %c0_7 = arith.constant 0 : index
    %c0_8 = arith.constant 0 : index
    %c0_9 = arith.constant 0 : index
    %21 = vector.load %arg4[%c0_7, %c0_8, %c0_9] : memref<1x16x128xf32, #tpu.memory_space<vmem>>, vector<1x16x128xf32>
    %22 = vector.shape_cast %21 : vector<1x16x128xf32> to vector<16x128xf32>
    %23 = arith.addf %22, %20 : vector<16x128xf32>
    %c0_10 = arith.constant 0 : index
    %c0_11 = arith.constant 0 : index
    %c0_12 = arith.constant 0 : index
    %24 = vector.load %arg4[%c0_10, %c0_11, %c0_12] : memref<1x16x128xf32, #tpu.memory_space<vmem>>, vector<1x16x128xf32>
    %25 = vector.shape_cast %24 : vector<1x16x128xf32> to vector<16x128xf32>
    %26 = vector.shape_cast %23 : vector<16x128xf32> to vector<1x16x128xf32>
    tpu.vector_store %arg4[%c0_10, %c0_11, %c0_12], %26 {strides = array<i32>} : memref<1x16x128xf32, #tpu.memory_space<vmem>>, vector<1x16x128xf32>,
    return
  }
  func.func @transform_0(%arg0: i32, %arg1: i32) -> (i32, i32) {
    %c1_i32 = arith.constant 1 : i32
    %0 = arith.muli %arg0, %c1_i32 : i32
    %1 = arith.addi %0, %arg1 : i32
    %c0_i32 = arith.constant 0 : i32
    %c0_i32_0 = arith.constant 0 : i32
    return %1, %c0_i32 : i32, i32
  }
  func.func @transform_1(%arg0: i32, %arg1: i32) -> (i32, i32) {
    %c1_i32 = arith.constant 1 : i32
    %0 = arith.muli %arg0, %c1_i32 : i32
    %1 = arith.addi %0, %arg1 : i32
    %c0_i32 = arith.constant 0 : i32
    %c0_i32_0 = arith.constant 0 : i32
    return %1, %c0_i32 : i32, i32
  }
  func.func @transform_2(%arg0: i32, %arg1: i32) -> (i32, i32, i32) {
    %c0_i32 = arith.constant 0 : i32
    %c0_i32_0 = arith.constant 0 : i32
    %c0_i32_1 = arith.constant 0 : i32
    return %arg0, %c0_i32, %c0_i32_0 : i32, i32, i32
  }
}

</mosaic_0001>

<llo_original>
// kernel: tpu_custom_call.1
$region0: #{tpu_custom_call.1}
  #allocation0 [shape = 'u32[]', space=smem, size = 0x4, offset = 0x4, fixed_abs, tag = 'smem constant byte address 0x4 - core index']
  #allocation1 [shape = 'u32[72,128]{1,0:T(1,128)}', space=vmem, size = 0x9000, scoped, tag = 'internal scratch']
  %s0 = inlined_call_operand.hbm [shape: f32[16,128], index: 0, kind: input, shape index: {}]
  %s1 = inlined_call_operand.hbm [shape: f32[16,128], index: 1, kind: input, shape index: {}]
  %s2 = inlined_call_operand.hbm [shape: f32[1,16,128], index: 2, kind: output, shape index: {}]
  %s3 = sld [smem:[#allocation0]]
  $region30: #{tpu_custom_call.1} parent=0
    _
  %s5 = ssub.s32 1, %s3
  %s6 = scalar_select 0, %s5, %s3
  $region1: #{tpu_custom_call.1} parent=0
    #allocation2 [shape = 'u8[8192]{0}', space=vmem, size = 0x2000, scoped, tag = 'input window, operand 0, single buffered']
    #allocation3 [shape = 's32[1]{0}', space=sflag, size = 0x4, scoped, tag = 'scoped memory for tpu_custom_call.1']
    #allocation4 [shape = 's32[1]{0}', space=sflag, size = 0x4, scoped, tag = 'scoped memory for tpu_custom_call.1']
    #allocation5 [shape = 'u8[8192]{0}', space=vmem, size = 0x2000, scoped, tag = 'input window, operand 1, single buffered']
    #allocation6 [shape = 's32[1]{0}', space=sflag, size = 0x4, scoped, tag = 'scoped memory for tpu_custom_call.1']
    #allocation7 [shape = 'u8[8192]{0}', space=vmem, size = 0x2000, scoped, tag = 'output window, operand 0, single buffered']
    %7 = vsyncpa [#allocation3], 0
    %8 = vsyncpa [#allocation6], 0
    %9 = vsyncpa [#allocation4], 0
    // Predicated region
    $region2: #{tpu_custom_call.1} parent=1 // pred_check
      _
    $region3: #{tpu_custom_call.1} parent=1 // pred_check_branch
      %11 = sbr.rel (0) target = $region5
    $region4: #{tpu_custom_call.1} parent=1 // pred_region
      %s12 = sadd.s32 0, 0
      %s13 = smul.u32 2, %s12
      %15 = vsyncadd [#allocation3], 0
      %s16 = smul.addr %s13, 8
      %s17 = scalar_lea.hbm %s0, %s16
      %s18 = sshll.u32 %s17, 4
      %s19 = int_to_ptr.hbm [resolvable:$true] %s18
      %s20 = sshll.u32 [#allocation2], 4
      %s21 = int_to_ptr.vmem [resolvable:$true] %s20
      %26 = dma.hbm_to_vmem [thread:$0]  %s19, 256, %s21, [#allocation3], 128, 128, 8
    $region5: #{tpu_custom_call.1} parent=1 // pred_fallthru
      _
    // Predicated region
    $region6: #{tpu_custom_call.1} parent=1 // pred_check
      _
    $region7: #{tpu_custom_call.1} parent=1 // pred_check_branch
      %28 = sbr.rel (0) target = $region9
    $region8: #{tpu_custom_call.1} parent=1 // pred_region
      %s29 = sadd.s32 0, 0
      %s30 = smul.u32 2, %s29
      %32 = vsyncadd [#allocation6], 0
      %s33 = smul.addr %s30, 8
      %s34 = scalar_lea.hbm %s1, %s33
      %s35 = sshll.u32 %s34, 4
      %s36 = int_to_ptr.hbm [resolvable:$true] %s35
      %s37 = sshll.u32 [#allocation5], 4
      %s38 = int_to_ptr.vmem [resolvable:$true] %s37
      %43 = dma.hbm_to_vmem [thread:$0]  %s36, 256, %s38, [#allocation6], 128, 128, 8
    $region9: #{tpu_custom_call.1} parent=1 // pred_fallthru
      _
    // Predicated region
    $region10: #{tpu_custom_call.1} parent=1 // pred_check
      _
    $region11: #{tpu_custom_call.1} parent=1 // pred_check_branch
      %45 = sbr.rel (0) target = $region13
    $region12: #{tpu_custom_call.1} parent=1 // pred_region
      %47 = dma.done [#allocation3], 256
    $region13: #{tpu_custom_call.1} parent=1 // pred_fallthru
      _
    // Predicated region
    $region14: #{tpu_custom_call.1} parent=1 // pred_check
      _
    $region15: #{tpu_custom_call.1} parent=1 // pred_check_branch
      %49 = sbr.rel (0) target = $region17
    $region16: #{tpu_custom_call.1} parent=1 // pred_region
      %51 = dma.done [#allocation6], 256
    $region17: #{tpu_custom_call.1} parent=1 // pred_fallthru
      _
    %s52 = sadd.s32 0, 0
    %s53 = smul.u32 2, %s52
    %s54 = sadd.s32 0, 0
    %s55 = smul.u32 2, %s54
    %p56 = scmp.eq.s32.totalorder 0, 0
    // Predicated region
    $region18: #{tpu_custom_call.1} parent=1 // pred_check
      %p57 = pneg %p56
    $region19: #{tpu_custom_call.1} parent=1 // pred_check_branch
      %59 = sbr.rel (%p57) target = $region21
    $region20: #{tpu_custom_call.1} parent=1 // pred_region
      %60 = vst [vmem:[#allocation7] sm:$0xff] 0.0
      %61 = vst [vmem:[#allocation7 + $0x8] sm:$0xff] 0.0
    $region21: #{tpu_custom_call.1} parent=1 // pred_fallthru
      _
    %v62 = vld [vmem:[#allocation2] sm:$0xff]
    %v63 = vld [vmem:[#allocation2 + $0x8] sm:$0xff]
    %v64 = vld [vmem:[#allocation5] sm:$0xff]
    %v65 = vld [vmem:[#allocation5 + $0x8] sm:$0xff]
    %v66 = vand.u32 2147483647, %v62
    %v67 = vand.u32 2147483647, %v63
    %v68 = vadd.f32 %v66, 1.0
    %v69 = vlog2.pop %v68
    %v70 = vmul.f32 %v69, 0.6931472
    %v71 = vmul.f32 -0.5, %v66
    %v72 = vadd.f32 %v71, 1.0
    %v73 = vmul.f32 %v72, %v66
    %v74 = vand.u32 2147483647, %v66
    %vm75 = vcmp.lt.f32.partialorder %v74, 0.0004427343
    %v76 = vsel %vm75, %v73, %v70
    %v77 = vadd.f32 %v67, 1.0
    %v78 = vlog2.pop %v77
    %v79 = vmul.f32 %v78, 0.6931472
    %v80 = vmul.f32 -0.5, %v67
    %v81 = vadd.f32 %v80, 1.0
    %v82 = vmul.f32 %v81, %v67
    %v83 = vand.u32 2147483647, %v67
    %vm84 = vcmp.lt.f32.partialorder %v83, 0.0004427343
    %v85 = vsel %vm84, %v82, %v79
    %vm86 = vcmp.lt.f32.partialorder %v62, 0.0
    %vm87 = vcmp.lt.f32.partialorder %v63, 0.0
    %v88 = vsub.f32 0.0, %v76
    %v89 = vsub.f32 0.0, %v85
    %v90 = vsel %vm86, %v88, %v76
    %v91 = vsel %vm87, %v89, %v85
    %v92 = vand.u32 2147483647, %v64
    %v93 = vand.u32 2147483647, %v65
    %v94 = vadd.f32 %v92, 1.0
    %v95 = vlog2.pop %v94
    %v96 = vmul.f32 %v95, 0.6931472
    %v97 = vmul.f32 -0.5, %v92
    %v98 = vadd.f32 %v97, 1.0
    %v99 = vmul.f32 %v98, %v92
    %v100 = vand.u32 2147483647, %v92
    %vm101 = vcmp.lt.f32.partialorder %v100, 0.0004427343
    %v102 = vsel %vm101, %v99, %v96
    %v103 = vadd.f32 %v93, 1.0
    %v104 = vlog2.pop %v103
    %v105 = vmul.f32 %v104, 0.6931472
    %v106 = vmul.f32 -0.5, %v93
    %v107 = vadd.f32 %v106, 1.0
    %v108 = vmul.f32 %v107, %v93
    %v109 = vand.u32 2147483647, %v93
    %vm110 = vcmp.lt.f32.partialorder %v109, 0.0004427343
    %v111 = vsel %vm110, %v108, %v105
    %vm112 = vcmp.lt.f32.partialorder %v64, 0.0
    %vm113 = vcmp.lt.f32.partialorder %v65, 0.0
    %v114 = vsub.f32 0.0, %v102
    %v115 = vsub.f32 0.0, %v111
    %v116 = vsel %vm112, %v114, %v102
    %v117 = vsel %vm113, %v115, %v111
    %v118 = vsub.f32 %v90, %v116
    %v119 = vsub.f32 %v91, %v117
    %v120 = vmul.f32 %v118, %v118
    %v121 = vmul.f32 %v119, %v119
    %v122 = vld [vmem:[#allocation7] sm:$0xff]
    %v123 = vld [vmem:[#allocation7 + $0x8] sm:$0xff]
    %v124 = vadd.f32 %v122, %v120
    %v125 = vadd.f32 %v123, %v121
    %126 = vst [vmem:[#allocation7] sm:$0xff] %v124
    %127 = vst [vmem:[#allocation7 + $0x8] sm:$0xff] %v125
    // Predicated region
    $region22: #{tpu_custom_call.1} parent=1 // pred_check
      _
    $region23: #{tpu_custom_call.1} parent=1 // pred_check_branch
      %129 = sbr.rel (0) target = $region25
    $region24: #{tpu_custom_call.1} parent=1 // pred_region
      %131 = vsyncadd [#allocation4], 0
      %s132 = sshll.u32 [#allocation7], 4
      %s133 = int_to_ptr.vmem [resolvable:$true] %s132
      %s134 = sshll.u32 %s2, 4
      %s135 = int_to_ptr.hbm [resolvable:$true] %s134
      %140 = dma.vmem_to_hbm [thread:$0]  %s133, 256, %s135, [#allocation4], 128, 128, 8
    $region25: #{tpu_custom_call.1} parent=1 // pred_fallthru
      _
    // Predicated region
    $region26: #{tpu_custom_call.1} parent=1 // pred_check
      _
    $region27: #{tpu_custom_call.1} parent=1 // pred_check_branch
      %142 = sbr.rel (0) target = $region29
    $region28: #{tpu_custom_call.1} parent=1 // pred_region
      %144 = dma.done [#allocation4], 256
    $region29: #{tpu_custom_call.1} parent=1 // pred_fallthru
      _
    %145 = vsyncpa [#allocation3], 1
    %146 = vsyncpa [#allocation6], 1
    %147 = vsyncpa [#allocation4], 1

</llo_original>
